<compile_context>
chip_gen: v7x
topology: tpu7x:2x2x1
jax: 0.10.0
libtpu: 0.0.40
codegen_flags: <defaults>
</compile_context>

<pallas_src>
import functools

import jax
import jax.numpy as jnp
from jax.experimental import pallas as pl
from jax.experimental.pallas import tpu as pltpu


# ----------------------------------------------------------------------------
# helpers
# ----------------------------------------------------------------------------
def _pick_tile(n, max_tile):
    """Largest tile <= max_tile that divides n (multiple of 8 when possible)."""
    if n <= max_tile:
        return n
    start = max_tile - (max_tile % 8)
    for t in range(start, 7, -8):
        if n % t == 0:
            return t
    return n


# ----------------------------------------------------------------------------
# scaled dot-product attention (multi-head, heads folded into the batch dim)
# ----------------------------------------------------------------------------
def _attention_kernel(q_ref, k_ref, v_ref, mask_ref, ctx_ref, attn_ref, *, scale):
    # q_ref: (BT, TQ, Dh)   k_ref/v_ref: (BT, Lk, Dh)   mask_ref: (BT, TQ, Lk) int8
    q = q_ref[...].astype(jnp.float32)
    if scale != 1.0:
        q = q * scale                      # fold scale into q (cheaper than scaling scores)
    k = k_ref[...]
    v = v_ref[...]

    # scores = q @ k^T, expressed as a batched dot_general contracting the last
    # dims directly -> MXU native transposed-operand path, no XLU transpose.
    scores = jax.lax.dot_general(
        q, k,
        dimension_numbers=(((2,), (2,)), ((0,), (0,))),
        preferred_element_type=jnp.float32,
    )                                      # (BT, TQ, Lk)

    # masked_fill_(attn_mask, -inf)  (NaN rows for fully-masked rows match PyTorch)
    scores = jnp.where(mask_ref[...] != 0, -jnp.inf, scores)

    # softmax over the key axis (PyTorch Softmax(dim=2))
    m = jnp.max(scores, axis=-1, keepdims=True)
    p = jnp.exp(scores - m)
    denom = jnp.sum(p, axis=-1, keepdims=True)
    attn = p * pl.reciprocal(denom, approx=True)   # EUP reciprocal, VALU stays free

    # dropout(p=0.0) is identity.

    # context = attn @ v   (cast attn to v.dtype -> bf16 MXU path when inputs are bf16)
    ctx = jax.lax.dot_general(
        attn.astype(v.dtype), v,
        dimension_numbers=(((2,), (1,)), ((0,), (0,))),
        preferred_element_type=jnp.float32,
    )                                      # (BT, TQ, Dh)

    attn_ref[...] = attn.astype(attn_ref.dtype)
    ctx_ref[...] = ctx.astype(ctx_ref.dtype)


def _multi_head_sdpa(q, k, v, mask_i8, scale, *,
                     max_tq=256, vmem_budget_bytes=24 * 1024 * 1024):
    """q,k,v: (B*H, L, Dh);  mask_i8: (B*H, Lq, Lk) int8.  Returns (ctx, attn)."""
    BH, Lq, Dh = q.shape
    Lk = k.shape[1]

    TQ = _pick_tile(Lq, max_tq)

    def step_bytes(bt):
        f32 = 4
        b = bt * (TQ * Dh * f32            # q block
                  + 2 * Lk * Dh * f32      # k, v blocks
                  + TQ * Lk * 1            # int8 mask block
                  + TQ * Dh * f32          # ctx out block
                  + TQ * Lk * f32)         # attn out block
        return 2 * b                       # double-buffered pipeline

    # How many (batch*head) slices per grid step: fill the MXU M dim / amortize
    # per-step overhead for small shapes, but stay inside the VMEM budget.
    BT = 1
    for cand in range(1, BH + 1):
        if BH % cand != 0 or step_bytes(cand) > vmem_budget_bytes:
            continue
        BT = cand
        if cand * TQ >= 128:
            break

    grid = (BH // BT, Lq // TQ)
    vmem_limit = int(min(max(2 * step_bytes(BT) + (8 << 20), 32 << 20), 48 << 20))

    kernel = functools.partial(_attention_kernel, scale=float(scale))

    grid_spec = pltpu.PrefetchScalarGridSpec(
        num_scalar_prefetch=0,
        grid=grid,
        in_specs=[
            pl.BlockSpec((BT, TQ, Dh), lambda bh, qi: (bh, qi, 0)),
            pl.BlockSpec((BT, Lk, Dh), lambda bh, qi: (bh, 0, 0)),
            pl.BlockSpec((BT, Lk, Dh), lambda bh, qi: (bh, 0, 0)),
            pl.BlockSpec((BT, TQ, Lk), lambda bh, qi: (bh, qi, 0)),
        ],
        out_specs=[
            pl.BlockSpec((BT, TQ, Dh), lambda bh, qi: (bh, qi, 0)),
            pl.BlockSpec((BT, TQ, Lk), lambda bh, qi: (bh, qi, 0)),
        ],
    )

    out_shapes = (
        jax.ShapeDtypeStruct((BH, Lq, Dh), q.dtype),
        jax.ShapeDtypeStruct((BH, Lq, Lk), jnp.float32),   # probabilities kept in f32
    )

    ctx, attn = pl.pallas_call(
        kernel,
        grid_spec=grid_spec,
        out_shape=out_shapes,
        compiler_params=pltpu.CompilerParams(
            dimension_semantics=("parallel", "parallel"),
            vmem_limit_bytes=vmem_limit,
        ),
    )(q, k, v, mask_i8)
    return ctx, attn


# ----------------------------------------------------------------------------
# plain linear:  y = x @ W + b      (used for the fused q/k/v projection)
# ----------------------------------------------------------------------------
def _linear_kernel(x_ref, w_ref, b_ref, o_ref):
    o_ref[...] = (
        jnp.dot(x_ref[...], w_ref[...], preferred_element_type=jnp.float32)
        + b_ref[...]
    ).astype(o_ref.dtype)


def _linear(x, w, b, *, max_rows=512):
    R, Din = x.shape
    Dout = w.shape[1]
    TR = _pick_tile(R, max_rows)
    return pl.pallas_call(
        _linear_kernel,
        grid_spec=pltpu.PrefetchScalarGridSpec(
            num_scalar_prefetch=0,
            grid=(R // TR,),
            in_specs=[
                pl.BlockSpec((TR, Din), lambda i: (i, 0)),
                pl.BlockSpec((Din, Dout), lambda i: (0, 0)),
                pl.BlockSpec((1, Dout), lambda i: (0, 0)),
            ],
            out_specs=pl.BlockSpec((TR, Dout), lambda i: (i, 0)),
        ),
        out_shape=jax.ShapeDtypeStruct((R, Dout), x.dtype),
        compiler_params=pltpu.CompilerParams(dimension_semantics=("parallel",)),
    )(x, w, b.reshape(1, Dout))


# ----------------------------------------------------------------------------
# output projection + residual + LayerNorm   (MHA epilogue)
# ----------------------------------------------------------------------------
def _proj_residual_ln_kernel(x_ref, w_ref, b_ref, res_ref, g_ref, bt_ref, o_ref, *, eps):
    y = jnp.dot(x_ref[...], w_ref[...], preferred_element_type=jnp.float32) + b_ref[...]
    h = res_ref[...].astype(jnp.float32) + y          # dropout(p=0) is identity
    mu = jnp.mean(h, axis=-1, keepdims=True)
    d = h - mu
    var = jnp.mean(d * d, axis=-1, keepdims=True)
    inv = jax.lax.rsqrt(var + eps)
    o_ref[...] = (d * inv * g_ref[...] + bt_ref[...]).astype(o_ref.dtype)


def _proj_residual_layernorm(x, w, b, residual, gamma, beta, *, eps=1e-5, max_rows=512):
    R, Din = x.shape
    Dout = w.shape[1]
    TR = _pick_tile(R, max_rows)
    kernel = functools.partial(_proj_residual_ln_kernel, eps=eps)
    return pl.pallas_call(
        kernel,
        grid_spec=pltpu.PrefetchScalarGridSpec(
            num_scalar_prefetch=0,
            grid=(R // TR,),
            in_specs=[
                pl.BlockSpec((TR, Din), lambda i: (i, 0)),
                pl.BlockSpec((Din, Dout), lambda i: (0, 0)),
                pl.BlockSpec((1, Dout), lambda i: (0, 0)),
                pl.BlockSpec((TR, Dout), lambda i: (i, 0)),
                pl.BlockSpec((1, Dout), lambda i: (0, 0)),
                pl.BlockSpec((1, Dout), lambda i: (0, 0)),
            ],
            out_specs=pl.BlockSpec((TR, Dout), lambda i: (i, 0)),
        ),
        out_shape=jax.ShapeDtypeStruct((R, Dout), x.dtype),
        compiler_params=pltpu.CompilerParams(dimension_semantics=("parallel",)),
    )(x, w, b.reshape(1, Dout), residual,
      gamma.reshape(1, Dout), beta.reshape(1, Dout))


# ----------------------------------------------------------------------------
# position-wise FFN + residual + LayerNorm
# ----------------------------------------------------------------------------
def _ffn_residual_ln_kernel(x_ref, w1_ref, b1_ref, w2_ref, b2_ref, g_ref, bt_ref,
                            o_ref, *, eps):
    x = x_ref[...].astype(jnp.float32)
    h = jnp.dot(x, w1_ref[...], preferred_element_type=jnp.float32) + b1_ref[...]
    h = jnp.maximum(h, 0.0)                               # ReLU
    y = jnp.dot(h.astype(w2_ref.dtype), w2_ref[...],
                preferred_element_type=jnp.float32) + b2_ref[...]
    z = x + y                                             # dropout(p=0) is identity
    mu = jnp.mean(z, axis=-1, keepdims=True)
    d = z - mu
    var = jnp.mean(d * d, axis=-1, keepdims=True)
    inv = jax.lax.rsqrt(var + eps)
    o_ref[...] = (d * inv * g_ref[...] + bt_ref[...]).astype(o_ref.dtype)


def _ffn_residual_layernorm(x, w1, b1, w2, b2, gamma, beta, *, eps=1e-5, max_rows=256):
    R, D = x.shape
    Fd = w1.shape[1]
    TR = _pick_tile(R, max_rows)
    kernel = functools.partial(_ffn_residual_ln_kernel, eps=eps)
    return pl.pallas_call(
        kernel,
        grid_spec=pltpu.PrefetchScalarGridSpec(
            num_scalar_prefetch=0,
            grid=(R // TR,),
            in_specs=[
                pl.BlockSpec((TR, D), lambda i: (i, 0)),
                pl.BlockSpec((D, Fd), lambda i: (0, 0)),
                pl.BlockSpec((1, Fd), lambda i: (0, 0)),
                pl.BlockSpec((Fd, D), lambda i: (0, 0)),
                pl.BlockSpec((1, D), lambda i: (0, 0)),
                pl.BlockSpec((1, D), lambda i: (0, 0)),
                pl.BlockSpec((1, D), lambda i: (0, 0)),
            ],
            out_specs=pl.BlockSpec((TR, D), lambda i: (i, 0)),
        ),
        out_shape=jax.ShapeDtypeStruct((R, D), x.dtype),
        compiler_params=pltpu.CompilerParams(dimension_semantics=("parallel",)),
    )(x, w1, b1.reshape(1, Fd), w2, b2.reshape(1, D),
      gamma.reshape(1, D), beta.reshape(1, D))


# ----------------------------------------------------------------------------
# full EncoderLayer forward
# ----------------------------------------------------------------------------
def encoder_layer_forward(params, inputs, attn_mask=None):
    """inputs: (B, L, model_dim), attn_mask: (B, L, L) bool (True = masked).

    Returns (output (B,L,D), attention (B,L,L)) — matches EncoderLayer.forward
    with all dropout probabilities = 0.
    """
    B, L, D = inputs.shape
    H = params["num_heads"]
    assert D % H == 0
    Dh = D // H

    x2d = inputs.reshape(B * L, D)

    # Fused q/k/v projections: one matmul against concatenated weights.
    w_qkv = jnp.concatenate([params["w_q"], params["w_k"], params["w_v"]], axis=1)
    b_qkv = jnp.concatenate([params["b_q"], params["b_k"], params["b_v"]], axis=0)
    qkv = _linear(x2d, w_qkv, b_qkv)                       # (B*L, 3D)
    q2d, k2d, v2d = jnp.split(qkv, 3, axis=-1)

    # Replicates torch's raw contiguous .view(B*H, -1, Dh) exactly.
    q = q2d.reshape(B * H, L, Dh)
    k = k2d.reshape(B * H, L, Dh)
    v = v2d.reshape(B * H, L, Dh)

    # Mask shipped as int8 (4x less DMA than int32); tile == torch .repeat(H,1,1).
    if attn_mask is not None:
        mask_i8 = jnp.tile(attn_mask, (H, 1, 1)).astype(jnp.int8)
    else:
        mask_i8 = jnp.zeros((B * H, L, L), dtype=jnp.int8)

    # scale = (key.size(-1) // num_heads) ** -0.5  (key last dim == Dh at that point).
    scale_base = Dh // H
    scale = float(scale_base) ** -0.5 if scale_base > 0 else 1.0  # `if scale:` skips falsy 0

    context, attention = _multi_head_sdpa(q, k, v, mask_i8, scale)

    context2d = context.reshape(B * L, D)                  # == torch .view(B, -1, H*Dh)

    # linear_final + residual + LayerNorm (MHA epilogue), then FFN block.
    out1 = _proj_residual_layernorm(context2d, params["w_o"], params["b_o"], x2d,
                                    params["ln1_g"], params["ln1_b"])
    out2 = _ffn_residual_layernorm(out1, params["w_ffn1"], params["b_ffn1"],
                                   params["w_ffn2"], params["b_ffn2"],
                                   params["ln2_g"], params["ln2_b"])

    output = out2.reshape(B, L, D)
    attention = attention.reshape(B, H, L, L).mean(axis=1)  # mean over heads (wrapper-side)
    return output, attention


# ----------------------------------------------------------------------------
# pure-JAX reference (mirrors the PyTorch math exactly)
# ----------------------------------------------------------------------------
def encoder_layer_reference(params, inputs, attn_mask=None, eps=1e-5):
    B, L, D = inputs.shape
    H = params["num_heads"]
    Dh = D // H
    x2d = inputs.reshape(B * L, D)

    q = (x2d @ params["w_q"] + params["b_q"]).reshape(B * H, L, Dh)
    k = (x2d @ params["w_k"] + params["b_k"]).reshape(B * H, L, Dh)
    v = (x2d @ params["w_v"] + params["b_v"]).reshape(B * H, L, Dh)

    scores = jnp.einsum("bqd,bkd->bqk", q, k)
    scale_base = Dh // H
    if scale_base > 0:
        scores = scores * (float(scale_base) ** -0.5)
    if attn_mask is not None:
        scores = jnp.where(jnp.tile(attn_mask, (H, 1, 1)), -jnp.inf, scores)
    attn = jax.nn.softmax(scores, axis=-1)
    ctx = jnp.einsum("bqk,bkd->bqd", attn, v).reshape(B * L, D)

    def ln(z, g, b):
        mu = z.mean(-1, keepdims=True)
        d = z - mu
        var = (d * d).mean(-1, keepdims=True)
        return d * jax.lax.rsqrt(var + eps) * g + b

    o1 = ln(x2d + (ctx @ params["w_o"] + params["b_o"]), params["ln1_g"], params["ln1_b"])
    h = jnp.maximum(o1 @ params["w_ffn1"] + params["b_ffn1"], 0.0)
    o2 = ln(o1 + (h @ params["w_ffn2"] + params["b_ffn2"]), params["ln2_g"], params["ln2_b"])

    out = o2.reshape(B, L, D)
    attn_mean = attn.reshape(B, H, L, L).mean(axis=1)
    return out, attn_mean


# ----------------------------------------------------------------------------
# demo / smoke test
# ----------------------------------------------------------------------------
if __name__ == "__main__":
    key = jax.random.PRNGKey(0)
    B, L, D, H, Fd = 2, 8, 32, 4, 64          # batch, visits, model_dim, heads, ffn_dim
    keys = jax.random.split(key, 16)

    def w(kk, shape, s=0.1):
        return jax.random.normal(kk, shape, jnp.float32) * s

    params = {
        "num_heads": H,
        "w_q": w(keys[0], (D, D)), "b_q": w(keys[1], (D,), 0.02),
        "w_k": w(keys[2], (D, D)), "b_k": w(keys[3], (D,), 0.02),
        "w_v": w(keys[4], (D, D)), "b_v": w(keys[5], (D,), 0.02),
        "w_o": w(keys[6], (D, D)), "b_o": w(keys[7], (D,), 0.02),
        "ln1_g": jnp.ones((D,), jnp.float32), "ln1_b": jnp.zeros((D,), jnp.float32),
        "w_ffn1": w(keys[8], (D, Fd)), "b_ffn1": w(keys[9], (Fd,), 0.02),
        "w_ffn2": w(keys[10], (Fd, D)), "b_ffn2": w(keys[11], (D,), 0.02),
        "ln2_g": jnp.ones((D,), jnp.float32), "ln2_b": jnp.zeros((D,), jnp.float32),
    }

    x = jax.random.normal(keys[12], (B, L, D), jnp.float32)
    attn_mask = jax.random.uniform(keys[13], (B, L, L)) < 0.2
    attn_mask = attn_mask & (~jnp.eye(L, dtype=bool)[None])   # never a fully-masked row

    out, attn = encoder_layer_forward(params, x, attn_mask)
    jax.block_until_ready((out, attn))

    ref_out, ref_attn = encoder_layer_reference(params, x, attn_mask)

    assert out.shape == (B, L, D) and attn.shape == (B, L, L)
    assert bool(jnp.all(jnp.isfinite(out))) and bool(jnp.all(jnp.isfinite(attn)))
    assert jnp.allclose(attn, ref_attn, atol=2e-3, rtol=2e-3), \
        float(jnp.max(jnp.abs(attn - ref_attn)))
    assert jnp.allclose(out, ref_out, atol=2e-3, rtol=2e-3), \
        float(jnp.max(jnp.abs(out - ref_out)))

    print("KERNEL_OK")
</pallas_src>

<mosaic_0001>
module attributes {stable_mosaic.version = 11 : i64} {
  func.func @_linear_kernel(%arg0: i32, %arg1: memref<16x32xf32, #tpu.memory_space<vmem>>, %arg2: memref<32x96xf32, #tpu.memory_space<vmem>>, %arg3: memref<1x96xf32, #tpu.memory_space<vmem>>, %arg4: memref<16x96xf32, #tpu.memory_space<vmem>>) attributes {dimension_semantics = [#tpu.dimension_semantics<parallel>], iteration_bounds = array<i64: 1>, scalar_prefetch = 0 : i64, scratch_operands = 0 : i64, tpu.core_type = #tpu.core_type<tc>, window_params = [{transform_indices = @transform_0, window_bounds = array<i64: 16, 32>}, {pipeline_mode = #tpu.pipeline_mode<synchronous>, transform_indices = @transform_1, window_bounds = array<i64: 32, 96>}, {pipeline_mode = #tpu.pipeline_mode<synchronous>, transform_indices = @transform_2, window_bounds = array<i64: 1, 96>}, {transform_indices = @transform_3, window_bounds = array<i64: 16, 96>}]} {
    %c0 = arith.constant 0 : index
    %c0_0 = arith.constant 0 : index
    %0 = vector.load %arg1[%c0, %c0_0] : memref<16x32xf32, #tpu.memory_space<vmem>>, vector<16x32xf32>
    %c0_1 = arith.constant 0 : index
    %c0_2 = arith.constant 0 : index
    %1 = vector.load %arg2[%c0_1, %c0_2] : memref<32x96xf32, #tpu.memory_space<vmem>>, vector<32x96xf32>
    %cst = arith.constant dense<0.000000e+00> : vector<16x96xf32>
    %2 = tpu.matmul %0, %1, %cst {dimension_numbers = #tpu.dot_dimension_numbers<[1], [0], [0], [1], [0, 0, 1, 1], [], []>} : vector<16x32xf32>, vector<32x96xf32>, vector<16x96xf32> -> vector<16x96xf32>
    %c0_3 = arith.constant 0 : index
    %c0_4 = arith.constant 0 : index
    %3 = vector.load %arg3[%c0_3, %c0_4] : memref<1x96xf32, #tpu.memory_space<vmem>>, vector<1x96xf32>
    %4 = vector.broadcast %3 : vector<1x96xf32> to vector<16x96xf32>
    %5 = arith.addf %2, %4 : vector<16x96xf32>
    %c0_5 = arith.constant 0 : index
    %c0_6 = arith.constant 0 : index
    %6 = vector.load %arg4[%c0_5, %c0_6] : memref<16x96xf32, #tpu.memory_space<vmem>>, vector<16x96xf32>
    tpu.vector_store %arg4[%c0_5, %c0_6], %5 {strides = array<i32>} : memref<16x96xf32, #tpu.memory_space<vmem>>, vector<16x96xf32>,
    return
  }
  func.func @transform_0(%arg0: i32) -> (i32, i32) {
    %c0_i32 = arith.constant 0 : i32
    %c0_i32_0 = arith.constant 0 : i32
    return %arg0, %c0_i32 : i32, i32
  }
  func.func @transform_1(%arg0: i32) -> (i32, i32) {
    %c0_i32 = arith.constant 0 : i32
    %c0_i32_0 = arith.constant 0 : i32
    %c0_i32_1 = arith.constant 0 : i32
    return %c0_i32, %c0_i32_0 : i32, i32
  }
  func.func @transform_2(%arg0: i32) -> (i32, i32) {
    %c0_i32 = arith.constant 0 : i32
    %c0_i32_0 = arith.constant 0 : i32
    %c0_i32_1 = arith.constant 0 : i32
    return %c0_i32, %c0_i32_0 : i32, i32
  }
  func.func @transform_3(%arg0: i32) -> (i32, i32) {
    %c0_i32 = arith.constant 0 : i32
    %c0_i32_0 = arith.constant 0 : i32
    return %arg0, %c0_i32 : i32, i32
  }
}

</mosaic_0001>

<llo_original>
// kernel: tpu_custom_call.1
$region0: #{tpu_custom_call.1}
  #allocation0 [shape = 'u32[]', space=smem, size = 0x4, offset = 0x4, fixed_abs, tag = 'smem constant byte address 0x4 - core index']
  #allocation1 [shape = 'u32[144,128]{1,0:T(1,128)}', space=vmem, size = 0x12000, scoped, tag = 'internal scratch']
  %s0 = inlined_call_operand.hbm [shape: f32[16,32], index: 0, kind: input, shape index: {}]
  %s1 = inlined_call_operand.hbm [shape: f32[32,96], index: 1, kind: input, shape index: {}]
  %s2 = inlined_call_operand.vmem [shape: f32[1,96], index: 2, kind: input, shape index: {}]
  %s3 = inlined_call_operand.hbm [shape: f32[16,96], index: 3, kind: output, shape index: {}]
  %s4 = sld [smem:[#allocation0]]
  $region30: #{tpu_custom_call.1} parent=0
    _
  %s6 = ssub.s32 1, %s4
  %s7 = scalar_select 0, %s6, %s4
  $region1: #{tpu_custom_call.1} parent=0
    #allocation2 [shape = 'u8[8192]{0}', space=vmem, size = 0x2000, scoped, tag = 'input window, operand 0, single buffered']
    #allocation3 [shape = 's32[1]{0}', space=sflag, size = 0x4, scoped, tag = 'scoped memory for tpu_custom_call.1']
    #allocation4 [shape = 's32[1]{0}', space=sflag, size = 0x4, scoped, tag = 'scoped memory for tpu_custom_call.1']
    #allocation5 [shape = 'u8[16384]{0}', space=vmem, size = 0x4000, scoped, tag = 'input window, operand 1, single buffered']
    #allocation6 [shape = 's32[1]{0}', space=sflag, size = 0x4, scoped, tag = 'scoped memory for tpu_custom_call.1']
    #allocation7 [shape = 'u8[8192]{0}', space=vmem, size = 0x2000, scoped, tag = 'output window, operand 0, single buffered']
    %8 = vsyncpa [#allocation3], 0
    %9 = vsyncpa [#allocation6], 0
    %10 = vsyncpa [#allocation4], 0
    // Predicated region
    $region2: #{tpu_custom_call.1} parent=1 // pred_check
      _
    $region3: #{tpu_custom_call.1} parent=1 // pred_check_branch
      %12 = sbr.rel (0) target = $region5
    $region4: #{tpu_custom_call.1} parent=1 // pred_region
      %s14 = ssub.s32 256, 256
      %15 = vsyncadd [#allocation3], %s14
      %s16 = sshll.u32 [#allocation2], 4
      %s17 = int_to_ptr.vmem [resolvable:$true] %s16
      %22 = dma.hbm_to_vmem [thread:$0]  %s0, 256, %s17, [#allocation3], 128, 128, 8
    $region5: #{tpu_custom_call.1} parent=1 // pred_fallthru
      _
    // Predicated region
    $region6: #{tpu_custom_call.1} parent=1 // pred_check
      _
    $region7: #{tpu_custom_call.1} parent=1 // pred_check_branch
      %24 = sbr.rel (0) target = $region9
    $region8: #{tpu_custom_call.1} parent=1 // pred_region
      %s26 = ssub.s32 512, 512
      %27 = vsyncadd [#allocation6], %s26
      %s28 = sshll.u32 [#allocation5], 4
      %s29 = int_to_ptr.vmem [resolvable:$true] %s28
      %34 = dma.hbm_to_vmem [thread:$0]  %s1, 512, %s29, [#allocation6], 128, 128, 8
    $region9: #{tpu_custom_call.1} parent=1 // pred_fallthru
      _
    // Predicated region
    $region10: #{tpu_custom_call.1} parent=1 // pred_check
      _
    $region11: #{tpu_custom_call.1} parent=1 // pred_check_branch
      %36 = sbr.rel (0) target = $region13
    $region12: #{tpu_custom_call.1} parent=1 // pred_region
      _
    $region13: #{tpu_custom_call.1} parent=1 // pred_fallthru
      _
    // Predicated region
    $region14: #{tpu_custom_call.1} parent=1 // pred_check
      _
    $region15: #{tpu_custom_call.1} parent=1 // pred_check_branch
      %38 = sbr.rel (0) target = $region17
    $region16: #{tpu_custom_call.1} parent=1 // pred_region
      %39 = dma.done [#allocation3], 256
    $region17: #{tpu_custom_call.1} parent=1 // pred_fallthru
      _
    // Predicated region
    $region18: #{tpu_custom_call.1} parent=1 // pred_check
      _
    $region19: #{tpu_custom_call.1} parent=1 // pred_check_branch
      %41 = sbr.rel (0) target = $region21
    $region20: #{tpu_custom_call.1} parent=1 // pred_region
      %42 = dma.done [#allocation6], 512
    $region21: #{tpu_custom_call.1} parent=1 // pred_fallthru
      _
    %v43 = vld [vmem:[#allocation2] sm:$0xff]
    %v44 = vld [vmem:[#allocation2 + $0x8] sm:$0xff]
    %v45 = vld [vmem:[#allocation5] sm:$0xff]
    %v46 = vld [vmem:[#allocation5 + $0x8] sm:$0xff]
    %v47 = vld [vmem:[#allocation5 + $0x10] sm:$0xff]
    %v48 = vld [vmem:[#allocation5 + $0x18] sm:$0xff]
    %v49 = vld [vmem:[%s2] sm:$0x1]
    %v51 = vlaneseq
    %v52 = vshrl.u32 %v51, 7
    %v53 = vsub.s32 0, %v52
    %v54 = vrot.slane %v49, %v53
    %vm56 = vcmask 261120
    %v58 = vsel %vm56, %v43, 0
    %v61 = vsel %vm56, %v44, 0
    %63 = vmatprep.subr.mxu0 0.0
    %64 = vmatpush1.msra.mxu0 %v45
    %65 = vmatprep.subr.mxu0 0.0
    %66 = vmatpush1.msra.mxu0 %v46
    %67 = vmatprep.subr.mxu0 0.0
    %68 = vmatpush1.msra.mxu0 %v47
    %69 = vmatprep.subr.mxu0 0.0
    %70 = vmatpush1.msra.mxu0 %v48
    %71 = vmatprep.subr.mxu0 0.0
    %72 = vmatpush1.msra.mxu0 0.0
    %73 = vmatprep.subr.mxu0 0.0
    %74 = vmatpush1.msra.mxu0 0.0
    %75 = vmatprep.subr.mxu0 0.0
    %76 = vmatpush1.msra.mxu0 0.0
    %77 = vmatprep.subr.mxu0 0.0
    %78 = vmatpush1.msra.mxu0 0.0
    %79 = vmatprep.subr.mxu0 0.0
    %80 = vmatpush1.msra.mxu0 0.0
    %81 = vmatprep.subr.mxu0 0.0
    %82 = vmatpush1.msra.mxu0 0.0
    %83 = vmatprep.subr.mxu0 0.0
    %84 = vmatpush1.msra.mxu0 0.0
    %85 = vmatprep.subr.mxu0 0.0
    %86 = vmatpush1.msra.mxu0 0.0
    %87 = vmatprep.subr.mxu0 0.0
    %88 = vmatpush1.msra.mxu0 0.0
    %89 = vmatprep.subr.mxu0 0.0
    %90 = vmatpush1.msra.mxu0 0.0
    %91 = vmatprep.subr.mxu0 0.0
    %92 = vmatpush1.msra.mxu0 0.0
    %93 = vmatprep.subr.mxu0 0.0
    %94 = vmatpush1.msra.mxu0 0.0
    %95 = vmatprep.subr.mxu0 0.0
    %96 = vmatpush1.msra.mxu0 0.0
    %97 = vmatprep.subr.mxu0 0.0
    %98 = vmatpush1.msra.mxu0 0.0
    %99 = vmatprep.subr.mxu0 0.0
    %100 = vmatpush1.msra.mxu0 0.0
    %101 = vmatprep.subr.mxu0 0.0
    %102 = vmatpush1.msra.mxu0 0.0
    %103 = vmatprep.subr.mxu0 0.0
    %104 = vmatpush1.msra.mxu0 0.0
    %105 = vmatprep.subr.mxu0 0.0
    %106 = vmatpush1.msra.mxu0 0.0
    %107 = vmatprep.subr.mxu0 0.0
    %108 = vmatpush1.msra.mxu0 0.0
    %109 = vmatprep.subr.mxu0 0.0
    %110 = vmatpush1.msra.mxu0 0.0
    %111 = vmatprep.subr.mxu0 0.0
    %112 = vmatpush1.msra.mxu0 0.0
    %113 = vmatprep.subr.mxu0 0.0
    %114 = vmatpush1.msra.mxu0 0.0
    %115 = vmatprep.subr.mxu0 0.0
    %116 = vmatpush1.msra.mxu0 0.0
    %117 = vmatprep.subr.mxu0 0.0
    %118 = vmatpush1.msra.mxu0 0.0
    %119 = vmatprep.subr.mxu0 0.0
    %120 = vmatpush1.msra.mxu0 0.0
    %121 = vmatprep.subr.mxu0 0.0
    %122 = vmatpush1.msra.mxu0 0.0
    %123 = vmatprep.subr.mxu0 0.0
    %124 = vmatpush1.msra.mxu0 0.0
    %125 = vmatprep.subr.mxu0 0.0
    %126 = vmatpush1.msra.mxu0 0.0
    %127 = vmatprep.mubr.f32.mxu0 0.0
    %128 = vmatmul.mubr.f32.gmra.mrb[0].mxu0 %v58
    %v129 = vpop.f32.mrb[0].mxu0
    %v130 = vadd.f32 %v54, %v129
    %v131 = vpop.f32.mrb[0].mxu0
    %132 = vmatprep.mubr.f32.mxu0 0.0
    %133 = vmatmul.mubr.f32.gmra.mrb[0].mxu0 %v61
    %v134 = vpop.f32.mrb[0].mxu0
    %v135 = vadd.f32 %v54, %v134
    %v136 = vpop.f32.mrb[0].mxu0
    %137 = vdwg.mxu0
    %vm138 = vcmask 785408
    %139 = vst.msk [vmem:[#allocation7] sm:$0xff] %vm138, %v130
    %140 = vst.msk [vmem:[#allocation7 + $0x8] sm:$0xff] %vm138, %v135
    // Predicated region
    $region22: #{tpu_custom_call.1} parent=1 // pred_check
      _
    $region23: #{tpu_custom_call.1} parent=1 // pred_check_branch
      %142 = sbr.rel (0) target = $region25
    $region24: #{tpu_custom_call.1} parent=1 // pred_region
      %s144 = ssub.s32 256, 256
      %145 = vsyncadd [#allocation4], %s144
      %s146 = sshll.u32 [#allocation7], 4
      %s147 = int_to_ptr.vmem [resolvable:$true] %s146
      %152 = dma.vmem_to_hbm [thread:$0]  %s147, 256, %s3, [#allocation4], 128, 128, 8
    $region25: #{tpu_custom_call.1} parent=1 // pred_fallthru
      _
    // Predicated region
    $region26: #{tpu_custom_call.1} parent=1 // pred_check
      _
    $region27: #{tpu_custom_call.1} parent=1 // pred_check_branch
      %154 = sbr.rel (0) target = $region29
    $region28: #{tpu_custom_call.1} parent=1 // pred_region
      %155 = dma.done [#allocation4], 256
    $region29: #{tpu_custom_call.1} parent=1 // pred_fallthru
      _
    %156 = vsyncpa [#allocation3], 1
    %157 = vsyncpa [#allocation6], 1
    %158 = vsyncpa [#allocation4], 1

</llo_original>
